<compile_context>
chip_gen: v7x
topology: tpu7x:2x2x1
jax: 0.10.0
libtpu: 0.0.40
codegen_flags: <defaults>
</compile_context>

<pallas_src>
import functools

import jax
import jax.numpy as jnp
from jax.experimental import pallas as pl
from jax.experimental.pallas import tpu as pltpu


_LANE_CANDIDATES = (512, 256, 128)       # lane-dense slab widths (multiples of 128)
_TARGET_BLOCK_ELEMS = 2 * 1024 * 1024    # 2M elems -> 8 MiB per f32 input block
_VMEM_LIMIT = 48 * 1024 * 1024           # 2 inputs x 2 bufs x 8 MiB + scratch < 48 MiB


def _sublane_multiple(dtype):
    # Min second-minor tile multiple by element width (f32:8, bf16:16, int8:32).
    return {4: 8, 2: 16, 1: 32}.get(jnp.dtype(dtype).itemsize, 8)


def _sigmoid(x):
    # sigmoid(x) == 0.5 * tanh(0.5 * x) + 0.5  (tanh goes to the EUP slot).
    return 0.5 * jnp.tanh(0.5 * x) + 0.5


def _bdice_kernel(yp_ref, yt_ref, inter_out, denom_out, inter_acc, denom_acc,
                  *, M, tm, L, acc_rows):
    # Grid = (P, nb): p = parallel core split, j = reduction steps.
    p = pl.program_id(0)
    j = pl.program_id(1)
    nb = pl.num_programs(1)

    @pl.when(j == 0)
    def _init():
        inter_acc[...] = jnp.zeros_like(inter_acc)   # sum(y_true * sigmoid(y_pred))
        denom_acc[...] = jnp.zeros_like(denom_acc)   # sum(y_true) + sum(sigmoid(y_pred))

    yp_raw = yp_ref[...].astype(jnp.float32)
    yt_raw = yt_ref[...].astype(jnp.float32)

    def fold(x):
        # (tm, L) -> (acc_rows, L) partial sums; pure vreg adds on the fast path.
        if acc_rows == 8:
            if tm == 8:
                return x
            return jnp.sum(x.reshape(tm // 8, 8, L), axis=0)
        return jnp.sum(x, axis=0, keepdims=True)     # tiny-tm path (tm == M < 8)

    def accumulate(yp, yt):
        inter_acc[...] += fold(yt * yp)
        denom_acc[...] += fold(yt + yp)

    if M % tm == 0:
        # All blocks are full: no masking anywhere on the hot path.
        accumulate(_sigmoid(yp_raw), yt_raw)
    else:
        start = (p * nb + j) * tm          # first global row of this block
        nvalid = M - start                 # rows of this block inside the array

        @pl.when(nvalid >= tm)
        def _full():
            accumulate(_sigmoid(yp_raw), yt_raw)

        @pl.when(nvalid < tm)              # only the single ragged block at runtime
        def _ragged():
            rows = jax.lax.broadcasted_iota(jnp.int32, (tm, L), 0)
            valid = rows < nvalid
            yp = jnp.where(valid, _sigmoid(yp_raw), 0.0)
            yt = jnp.where(valid, yt_raw, 0.0)
            accumulate(yp, yt)

    @pl.when(j == nb - 1)
    def _finalize():
        # Fold lane-tiles (VALU) then sublanes (XLU, idle) down to (1, 128).
        def lane_fold(acc):
            r = acc[:, 0:128]
            for k in range(1, L // 128):
                r = r + acc[:, k * 128:(k + 1) * 128]
            return jnp.sum(r, axis=0, keepdims=True)

        inter_out[...] = lane_fold(inter_acc[...])
        denom_out[...] = lane_fold(denom_acc[...])


def _dice_sums_pallas(yp_flat, yt_flat):
    """Returns (sum(yt*sigmoid(yp)), sum(yt)+sum(sigmoid(yp))) for a flat slab.

    len(yp_flat) must be a multiple of 128 (caller guarantees this).
    """
    E = yp_flat.shape[0]

    # Lane width: largest of (512, 256, 128) dividing E, preferring M >= 8.
    L = None
    for cand in _LANE_CANDIDATES:
        if E % cand == 0 and E // cand >= 8:
            L = cand
            break
    if L is None:
        for cand in _LANE_CANDIDATES:
            if E % cand == 0:
                L = cand
                break
    M = E // L

    sub = max(_sublane_multiple(yp_flat.dtype), _sublane_multiple(yt_flat.dtype))
    if M <= sub:
        tm = M                                      # block == full row extent (legal)
    else:
        tm = min(_TARGET_BLOCK_ELEMS // L, M)
        tm = max(sub, (tm // sub) * sub)            # multiple of sublane tile, <= M
    acc_rows = 8 if tm % 8 == 0 else 1

    nbt = -(-M // tm)                               # total reduction blocks (ceil)
    # Parallel split only when it costs nothing on 1-TC chips (no duplicate block).
    P = 2 if (nbt >= 2 and nbt % 2 == 0) else 1
    nb = nbt // P

    yp2 = yp_flat.reshape(M, L)                     # row-major reshape: free (bitcast)
    yt2 = yt_flat.reshape(M, L)

    kernel = functools.partial(_bdice_kernel, M=M, tm=tm, L=L, acc_rows=acc_rows)
    in_spec = pl.BlockSpec((tm, L), lambda p, j: (p * nb + j, 0))
    out_spec = pl.BlockSpec((None, 1, 128), lambda p, j: (p, 0, 0))
    out_shape = jax.ShapeDtypeStruct((P, 1, 128), jnp.float32)

    inter, denom = pl.pallas_call(
        kernel,
        out_shape=(out_shape, out_shape),
        grid_spec=pltpu.PrefetchScalarGridSpec(
            num_scalar_prefetch=0,
            grid=(P, nb),
            in_specs=[in_spec, in_spec],
            out_specs=(out_spec, out_spec),
            scratch_shapes=[pltpu.VMEM((acc_rows, L), jnp.float32),
                            pltpu.VMEM((acc_rows, L), jnp.float32)],
        ),
        compiler_params=pltpu.CompilerParams(
            dimension_semantics=("parallel", "arbitrary"),
            vmem_limit_bytes=_VMEM_LIMIT,
        ),
    )(yp2, yt2)

    return jnp.sum(inter), jnp.sum(denom)


def _dice_sums_jax(yp_flat, yt_flat):
    # Tiny-tail / degenerate fallback (never more than 127 elements on the hybrid path).
    yp = _sigmoid(yp_flat.astype(jnp.float32))
    yt = yt_flat.astype(jnp.float32)
    return jnp.sum(yt * yp), jnp.sum(yt) + jnp.sum(yp)


def _centercrop(image, w, h):
    # Mirrors torchlib centercrop: crop only when BOTH pads are > 0.
    nt, ct, ht, wt = image.shape
    padw, padh = (wt - w) // 2, (ht - h) // 2
    if padw > 0 and padh > 0:
        image = image[:, :, padh:ht - padh, padw:wt - padw]
    return image


def bdice_loss(y_pred, y_true):
    n, ch, h, w = y_pred.shape
    y_true = _centercrop(y_true, w, h)
    # TODO(synk): fuse the centercrop into the kernel's index_map to avoid the
    # strided-slice copy of y_true when the crop actually fires.
    assert y_true.shape == y_pred.shape, "y_true does not crop to y_pred's shape"

    E = n * ch * h * w
    yp_flat = y_pred.reshape(-1)
    yt_flat = y_true.reshape(-1)

    E_main = (E // 128) * 128
    if E_main == 0:
        inter, denom = _dice_sums_jax(yp_flat, yt_flat)
    elif E_main == E:
        inter, denom = _dice_sums_pallas(yp_flat, yt_flat)
    else:
        # Lane-ragged tail (< 128 elems): kernel on the aligned prefix, tiny
        # tail in plain JAX — no whole-array pad / copy.
        i0, d0 = _dice_sums_pallas(yp_flat[:E_main], yt_flat[:E_main])
        i1, d1 = _dice_sums_jax(yp_flat[E_main:], yt_flat[E_main:])
        inter, denom = i0 + i1, d0 + d1

    smooth = 1.0
    score = (2.0 * inter + smooth) / (denom + smooth)
    return (1.0 - score).astype(jnp.float32)


def bdice_loss_ref(y_pred, y_true):
    # Pure-JAX reference for sanity checking.
    n, ch, h, w = y_pred.shape
    y_true = _centercrop(y_true, w, h)
    yp = jax.nn.sigmoid(y_pred.astype(jnp.float32))
    yt = y_true.astype(jnp.float32)
    smooth = 1.0
    score = (2.0 * jnp.sum(yt * yp) + smooth) / (jnp.sum(yt) + jnp.sum(yp) + smooth)
    return 1.0 - score


if __name__ == "__main__":
    key = jax.random.PRNGKey(0)
    k1, k2 = jax.random.split(key)
    # Small NCHW shapes; y_true slightly larger to exercise centercrop.
    y_pred = jax.random.normal(k1, (2, 4, 16, 16), dtype=jnp.float32)
    y_true = (jax.random.uniform(k2, (2, 4, 20, 20)) > 0.5).astype(jnp.float32)

    loss = jax.block_until_ready(bdice_loss(y_pred, y_true))
    ref = jax.block_until_ready(bdice_loss_ref(y_pred, y_true))
    assert jnp.allclose(loss, ref, atol=1e-5, rtol=1e-5), (loss, ref)
    print("KERNEL_OK")
</pallas_src>

<mosaic_0001>
module attributes {stable_mosaic.version = 11 : i64} {
  func.func @_bdice_kernel(%arg0: i32, %arg1: i32, %arg2: memref<8x256xf32, #tpu.memory_space<vmem>>, %arg3: memref<8x256xf32, #tpu.memory_space<vmem>>, %arg4: memref<1x1x128xf32, #tpu.memory_space<vmem>>, %arg5: memref<1x1x128xf32, #tpu.memory_space<vmem>>, %arg6: memref<8x256xf32, #tpu.memory_space<vmem>>, %arg7: memref<8x256xf32, #tpu.memory_space<vmem>>) attributes {dimension_semantics = [#tpu.dimension_semantics<parallel>, #tpu.dimension_semantics<arbitrary>], iteration_bounds = array<i64: 1, 1>, scalar_prefetch = 0 : i64, scratch_operands = 2 : i64, tpu.core_type = #tpu.core_type<tc>, window_params = [{transform_indices = @transform_0, window_bounds = array<i64: 8, 256>}, {transform_indices = @transform_1, window_bounds = array<i64: 8, 256>}, {transform_indices = @transform_2, window_bounds = array<i64: 1, 1, 128>}, {transform_indices = @transform_3, window_bounds = array<i64: 1, 1, 128>}]} {
    %c0_i32 = arith.constant 0 : i32
    %0 = arith.cmpi eq, %arg1, %c0_i32 : i32
    %1 = arith.extui %0 : i1 to i32
    %c0_i32_0 = arith.constant 0 : i32
    %2 = arith.cmpi ne, %1, %c0_i32_0 : i32
    scf.if %2 {
      %cst_16 = arith.constant 0.000000e+00 : f32
      %23 = vector.broadcast %cst_16 : f32 to vector<8x256xf32>
      %c0_17 = arith.constant 0 : index
      %c0_18 = arith.constant 0 : index
      %24 = vector.load %arg6[%c0_17, %c0_18] : memref<8x256xf32, #tpu.memory_space<vmem>>, vector<8x256xf32>
      tpu.vector_store %arg6[%c0_17, %c0_18], %23 {strides = array<i32>} : memref<8x256xf32, #tpu.memory_space<vmem>>, vector<8x256xf32>,
      %cst_19 = arith.constant 0.000000e+00 : f32
      %25 = vector.broadcast %cst_19 : f32 to vector<8x256xf32>
      %c0_20 = arith.constant 0 : index
      %c0_21 = arith.constant 0 : index
      %26 = vector.load %arg7[%c0_20, %c0_21] : memref<8x256xf32, #tpu.memory_space<vmem>>, vector<8x256xf32>
      tpu.vector_store %arg7[%c0_20, %c0_21], %25 {strides = array<i32>} : memref<8x256xf32, #tpu.memory_space<vmem>>, vector<8x256xf32>,
    } else {
    }
    %c0 = arith.constant 0 : index
    %c0_1 = arith.constant 0 : index
    %3 = vector.load %arg2[%c0, %c0_1] : memref<8x256xf32, #tpu.memory_space<vmem>>, vector<8x256xf32>
    %c0_2 = arith.constant 0 : index
    %c0_3 = arith.constant 0 : index
    %4 = vector.load %arg3[%c0_2, %c0_3] : memref<8x256xf32, #tpu.memory_space<vmem>>, vector<8x256xf32>
    %cst = arith.constant 5.000000e-01 : f32
    %5 = vector.broadcast %cst : f32 to vector<8x256xf32>
    %6 = arith.mulf %5, %3 : vector<8x256xf32>
    %7 = math.tanh %6 : vector<8x256xf32>
    %cst_4 = arith.constant 5.000000e-01 : f32
    %8 = vector.broadcast %cst_4 : f32 to vector<8x256xf32>
    %9 = arith.mulf %8, %7 : vector<8x256xf32>
    %cst_5 = arith.constant 5.000000e-01 : f32
    %10 = vector.broadcast %cst_5 : f32 to vector<8x256xf32>
    %11 = arith.addf %9, %10 : vector<8x256xf32>
    %c0_6 = arith.constant 0 : index
    %c0_7 = arith.constant 0 : index
    %12 = vector.load %arg6[%c0_6, %c0_7] : memref<8x256xf32, #tpu.memory_space<vmem>>, vector<8x256xf32>
    %13 = arith.mulf %4, %11 : vector<8x256xf32>
    %14 = arith.addf %12, %13 : vector<8x256xf32>
    %c0_8 = arith.constant 0 : index
    %c0_9 = arith.constant 0 : index
    %15 = vector.load %arg6[%c0_8, %c0_9] : memref<8x256xf32, #tpu.memory_space<vmem>>, vector<8x256xf32>
    tpu.vector_store %arg6[%c0_8, %c0_9], %14 {strides = array<i32>} : memref<8x256xf32, #tpu.memory_space<vmem>>, vector<8x256xf32>,
    %c0_10 = arith.constant 0 : index
    %c0_11 = arith.constant 0 : index
    %16 = vector.load %arg7[%c0_10, %c0_11] : memref<8x256xf32, #tpu.memory_space<vmem>>, vector<8x256xf32>
    %17 = arith.addf %4, %11 : vector<8x256xf32>
    %18 = arith.addf %16, %17 : vector<8x256xf32>
    %c0_12 = arith.constant 0 : index
    %c0_13 = arith.constant 0 : index
    %19 = vector.load %arg7[%c0_12, %c0_13] : memref<8x256xf32, #tpu.memory_space<vmem>>, vector<8x256xf32>
    tpu.vector_store %arg7[%c0_12, %c0_13], %18 {strides = array<i32>} : memref<8x256xf32, #tpu.memory_space<vmem>>, vector<8x256xf32>,
    %c0_i32_14 = arith.constant 0 : i32
    %20 = arith.cmpi eq, %arg1, %c0_i32_14 : i32
    %21 = arith.extui %20 : i1 to i32
    %c0_i32_15 = arith.constant 0 : i32
    %22 = arith.cmpi ne, %21, %c0_i32_15 : i32
    scf.if %22 {
      %c0_16 = arith.constant 0 : index
      %c0_17 = arith.constant 0 : index
      %23 = vector.load %arg6[%c0_16, %c0_17] : memref<8x256xf32, #tpu.memory_space<vmem>>, vector<8x256xf32>
      %24 = vector.extract_strided_slice %23 {offsets = [0, 0], sizes = [8, 128], strides = [1, 1]} : vector<8x256xf32> to vector<8x128xf32>
      %25 = vector.extract_strided_slice %23 {offsets = [0, 128], sizes = [8, 128], strides = [1, 1]} : vector<8x256xf32> to vector<8x128xf32>
      %26 = arith.addf %24, %25 : vector<8x128xf32>
      %cst_18 = arith.constant dense<0.000000e+00> : vector<128xf32>
      %27 = vector.multi_reduction <add>, %26, %cst_18 [0] : vector<8x128xf32> to vector<128xf32>
      %28 = vector.shape_cast %27 : vector<128xf32> to vector<1x128xf32>
      %c0_19 = arith.constant 0 : index
      %c0_20 = arith.constant 0 : index
      %c0_21 = arith.constant 0 : index
      %29 = vector.load %arg4[%c0_19, %c0_20, %c0_21] : memref<1x1x128xf32, #tpu.memory_space<vmem>>, vector<1x1x128xf32>
      %30 = vector.shape_cast %29 : vector<1x1x128xf32> to vector<1x128xf32>
      %31 = vector.shape_cast %28 : vector<1x128xf32> to vector<1x1x128xf32>
      tpu.vector_store %arg4[%c0_19, %c0_20, %c0_21], %31 {strides = array<i32>} : memref<1x1x128xf32, #tpu.memory_space<vmem>>, vector<1x1x128xf32>,
      %c0_22 = arith.constant 0 : index
      %c0_23 = arith.constant 0 : index
      %32 = vector.load %arg7[%c0_22, %c0_23] : memref<8x256xf32, #tpu.memory_space<vmem>>, vector<8x256xf32>
      %33 = vector.extract_strided_slice %32 {offsets = [0, 0], sizes = [8, 128], strides = [1, 1]} : vector<8x256xf32> to vector<8x128xf32>
      %34 = vector.extract_strided_slice %32 {offsets = [0, 128], sizes = [8, 128], strides = [1, 1]} : vector<8x256xf32> to vector<8x128xf32>
      %35 = arith.addf %33, %34 : vector<8x128xf32>
      %cst_24 = arith.constant dense<0.000000e+00> : vector<128xf32>
      %36 = vector.multi_reduction <add>, %35, %cst_24 [0] : vector<8x128xf32> to vector<128xf32>
      %37 = vector.shape_cast %36 : vector<128xf32> to vector<1x128xf32>
      %c0_25 = arith.constant 0 : index
      %c0_26 = arith.constant 0 : index
      %c0_27 = arith.constant 0 : index
      %38 = vector.load %arg5[%c0_25, %c0_26, %c0_27] : memref<1x1x128xf32, #tpu.memory_space<vmem>>, vector<1x1x128xf32>
      %39 = vector.shape_cast %38 : vector<1x1x128xf32> to vector<1x128xf32>
      %40 = vector.shape_cast %37 : vector<1x128xf32> to vector<1x1x128xf32>
      tpu.vector_store %arg5[%c0_25, %c0_26, %c0_27], %40 {strides = array<i32>} : memref<1x1x128xf32, #tpu.memory_space<vmem>>, vector<1x1x128xf32>,
    } else {
    }
    return
  }
  func.func @transform_0(%arg0: i32, %arg1: i32) -> (i32, i32) {
    %c1_i32 = arith.constant 1 : i32
    %0 = arith.muli %arg0, %c1_i32 : i32
    %1 = arith.addi %0, %arg1 : i32
    %c0_i32 = arith.constant 0 : i32
    %c0_i32_0 = arith.constant 0 : i32
    return %1, %c0_i32 : i32, i32
  }
  func.func @transform_1(%arg0: i32, %arg1: i32) -> (i32, i32) {
    %c1_i32 = arith.constant 1 : i32
    %0 = arith.muli %arg0, %c1_i32 : i32
    %1 = arith.addi %0, %arg1 : i32
    %c0_i32 = arith.constant 0 : i32
    %c0_i32_0 = arith.constant 0 : i32
    return %1, %c0_i32 : i32, i32
  }
  func.func @transform_2(%arg0: i32, %arg1: i32) -> (i32, i32, i32) {
    %c0_i32 = arith.constant 0 : i32
    %c0_i32_0 = arith.constant 0 : i32
    %c0_i32_1 = arith.constant 0 : i32
    return %arg0, %c0_i32, %c0_i32_0 : i32, i32, i32
  }
  func.func @transform_3(%arg0: i32, %arg1: i32) -> (i32, i32, i32) {
    %c0_i32 = arith.constant 0 : i32
    %c0_i32_0 = arith.constant 0 : i32
    %c0_i32_1 = arith.constant 0 : i32
    return %arg0, %c0_i32, %c0_i32_0 : i32, i32, i32
  }
}

</mosaic_0001>

<llo_original>
// kernel: tpu_custom_call.1
$region0: #{tpu_custom_call.1}
  #allocation0 [shape = 'u32[]', space=smem, size = 0x4, offset = 0x4, fixed_abs, tag = 'smem constant byte address 0x4 - core index']
  #allocation1 [shape = 'u32[144,128]{1,0:T(1,128)}', space=vmem, size = 0x12000, scoped, tag = 'internal scratch']
  #allocation2 [shape = 'f32[8,256]{1,0:T(8,128)}', space=vmem, size = 0x2000, scoped, tag = 'scratch operand']
  #allocation3 [shape = 'f32[8,256]{1,0:T(8,128)}', space=vmem, size = 0x2000, scoped, tag = 'scratch operand']
  %s0 = inlined_call_operand.hbm [shape: f32[8,256], index: 0, kind: input, shape index: {}]
  %s1 = inlined_call_operand.hbm [shape: f32[8,256], index: 1, kind: input, shape index: {}]
  %s2 = inlined_call_operand.hbm [shape: f32[1,1,128], index: 2, kind: output, shape index: {0}]
  %s3 = inlined_call_operand.hbm [shape: f32[1,1,128], index: 3, kind: output, shape index: {1}]
  %4 = xla_tuple %s2, %s3
  %s5 = sld [smem:[#allocation0]]
  $region42: #{tpu_custom_call.1} parent=0
    _
  %s7 = ssub.s32 1, %s5
  %s8 = scalar_select 0, %s7, %s5
  $region1: #{tpu_custom_call.1} parent=0
    #allocation4 [shape = 'u8[8192]{0}', space=vmem, size = 0x2000, scoped, tag = 'input window, operand 0, single buffered']
    #allocation5 [shape = 's32[1]{0}', space=sflag, size = 0x4, scoped, tag = 'scoped memory for tpu_custom_call.1']
    #allocation6 [shape = 's32[1]{0}', space=sflag, size = 0x4, scoped, tag = 'scoped memory for tpu_custom_call.1']
    #allocation7 [shape = 'u8[8192]{0}', space=vmem, size = 0x2000, scoped, tag = 'input window, operand 1, single buffered']
    #allocation8 [shape = 's32[1]{0}', space=sflag, size = 0x4, scoped, tag = 'scoped memory for tpu_custom_call.1']
    #allocation9 [shape = 'u8[512]{0}', space=vmem, size = 0x400, scoped, tag = 'output window, operand 0, single buffered']
    #allocation10 [shape = 'u8[512]{0}', space=vmem, size = 0x400, scoped, tag = 'output window, operand 1, single buffered']
    #allocation11 [shape = 's32[1]{0}', space=sflag, size = 0x4, scoped, tag = 'scoped memory for tpu_custom_call.1']
    %9 = vsyncpa [#allocation5], 0
    %10 = vsyncpa [#allocation8], 0
    %11 = vsyncpa [#allocation6], 0
    %12 = vsyncpa [#allocation11], 0
    // Predicated region
    $region2: #{tpu_custom_call.1} parent=1 // pred_check
      _
    $region3: #{tpu_custom_call.1} parent=1 // pred_check_branch
      %14 = sbr.rel (0) target = $region5
    $region4: #{tpu_custom_call.1} parent=1 // pred_region
      %s15 = sadd.s32 0, 0
      %s17 = ssub.s32 256, 256
      %18 = vsyncadd [#allocation5], %s17
      %s19 = smul.addr %s15, 2
      %s20 = smul.addr %s19, 128
      %s21 = scalar_lea.hbm %s0, %s20
      %s23 = sshll.u32 [#allocation4], 4
      %s24 = int_to_ptr.vmem [resolvable:$true] %s23
      %26 = dma.hbm_to_vmem [thread:$0]  %s21, 256, %s24, [#allocation5]
    $region5: #{tpu_custom_call.1} parent=1 // pred_fallthru
      _
    // Predicated region
    $region6: #{tpu_custom_call.1} parent=1 // pred_check
      _
    $region7: #{tpu_custom_call.1} parent=1 // pred_check_branch
      %28 = sbr.rel (0) target = $region9
    $region8: #{tpu_custom_call.1} parent=1 // pred_region
      %s29 = sadd.s32 0, 0
      %s31 = ssub.s32 256, 256
      %32 = vsyncadd [#allocation8], %s31
      %s33 = smul.addr %s29, 2
      %s34 = smul.addr %s33, 128
      %s35 = scalar_lea.hbm %s1, %s34
      %s37 = sshll.u32 [#allocation7], 4
      %s38 = int_to_ptr.vmem [resolvable:$true] %s37
      %40 = dma.hbm_to_vmem [thread:$0]  %s35, 256, %s38, [#allocation8]
    $region9: #{tpu_custom_call.1} parent=1 // pred_fallthru
      _
    // Predicated region
    $region10: #{tpu_custom_call.1} parent=1 // pred_check
      _
    $region11: #{tpu_custom_call.1} parent=1 // pred_check_branch
      %42 = sbr.rel (0) target = $region13
    $region12: #{tpu_custom_call.1} parent=1 // pred_region
      %43 = dma.done [#allocation5], 256
    $region13: #{tpu_custom_call.1} parent=1 // pred_fallthru
      _
    // Predicated region
    $region14: #{tpu_custom_call.1} parent=1 // pred_check
      _
    $region15: #{tpu_custom_call.1} parent=1 // pred_check_branch
      %45 = sbr.rel (0) target = $region17
    $region16: #{tpu_custom_call.1} parent=1 // pred_region
      %46 = dma.done [#allocation8], 256
    $region17: #{tpu_custom_call.1} parent=1 // pred_fallthru
      _
    %s47 = sadd.s32 0, 0
    %s48 = sadd.s32 0, 0
    %p49 = scmp.eq.s32.totalorder 0, 0
    // Predicated region
    $region18: #{tpu_custom_call.1} parent=1 // pred_check
      %p50 = pneg %p49
    $region19: #{tpu_custom_call.1} parent=1 // pred_check_branch
      %52 = sbr.rel (%p50) target = $region21
    $region20: #{tpu_custom_call.1} parent=1 // pred_region
      %53 = vst [vmem:[#allocation2] sm:$0xff] 0.0
      %54 = vst [vmem:[#allocation2 + $0x8] sm:$0xff] 0.0
      %55 = vst [vmem:[#allocation3] sm:$0xff] 0.0
      %56 = vst [vmem:[#allocation3 + $0x8] sm:$0xff] 0.0
    $region21: #{tpu_custom_call.1} parent=1 // pred_fallthru
      _
    %v57 = vld [vmem:[#allocation4] sm:$0xff]
    %v58 = vld [vmem:[#allocation4 + $0x8] sm:$0xff]
    %v59 = vld [vmem:[#allocation7] sm:$0xff]
    %v60 = vld [vmem:[#allocation7 + $0x8] sm:$0xff]
    %v61 = vmul.f32 %v57, 0.5
    %v62 = vmul.f32 %v58, 0.5
    %v63 = vtanh.pop %v61
    %v64 = vtanh.pop %v62
    %v65 = vmul.f32 %v63, 0.5
    %v66 = vmul.f32 %v64, 0.5
    %v67 = vadd.f32 %v65, 0.5
    %v68 = vadd.f32 %v66, 0.5
    %v69 = vld [vmem:[#allocation2] sm:$0xff]
    %v70 = vld [vmem:[#allocation2 + $0x8] sm:$0xff]
    %v71 = vmul.f32 %v59, %v67
    %v72 = vmul.f32 %v60, %v68
    %v73 = vadd.f32 %v69, %v71
    %v74 = vadd.f32 %v70, %v72
    %75 = vst [vmem:[#allocation2] sm:$0xff] %v73
    %76 = vst [vmem:[#allocation2 + $0x8] sm:$0xff] %v74
    %v77 = vld [vmem:[#allocation3] sm:$0xff]
    %v78 = vld [vmem:[#allocation3 + $0x8] sm:$0xff]
    %v79 = vadd.f32 %v59, %v67
    %v80 = vadd.f32 %v60, %v68
    %v81 = vadd.f32 %v77, %v79
    %v82 = vadd.f32 %v78, %v80
    %83 = vst [vmem:[#allocation3] sm:$0xff] %v81
    %84 = vst [vmem:[#allocation3 + $0x8] sm:$0xff] %v82
    // Predicated region
    $region22: #{tpu_custom_call.1} parent=1 // pred_check
      %p85 = pneg %p49
    $region23: #{tpu_custom_call.1} parent=1 // pred_check_branch
      %87 = sbr.rel (%p85) target = $region25
    $region24: #{tpu_custom_call.1} parent=1 // pred_region
      %v88 = vld [vmem:[#allocation2] sm:$0xff]
      %v89 = vld [vmem:[#allocation2 + $0x8] sm:$0xff]
      %v90 = vadd.f32 %v88, %v89
      %v91 = vrot.slane %v90, 4
      %v92 = vadd.f32 %v90, %v91
      %v93 = vrot.slane %v92, 2
      %v94 = vadd.f32 %v92, %v93
      %v95 = vrot.slane %v94, 1
      %v96 = vadd.f32 %v94, %v95
      %97 = vst [vmem:[#allocation9] sm:$0x1] %v96
      %v98 = vld [vmem:[#allocation3] sm:$0xff]
      %v99 = vld [vmem:[#allocation3 + $0x8] sm:$0xff]
      %v100 = vadd.f32 %v98, %v99
      %v101 = vrot.slane %v100, 4
      %v102 = vadd.f32 %v100, %v101
      %v103 = vrot.slane %v102, 2
      %v104 = vadd.f32 %v102, %v103
      %v105 = vrot.slane %v104, 1
      %v106 = vadd.f32 %v104, %v105
      %107 = vst [vmem:[#allocation10] sm:$0x1] %v106
    $region25: #{tpu_custom_call.1} parent=1 // pred_fallthru
      _
    // Predicated region
    $region26: #{tpu_custom_call.1} parent=1 // pred_check
      _
    $region27: #{tpu_custom_call.1} parent=1 // pred_check_branch
      %109 = sbr.rel (0) target = $region29
    $region28: #{tpu_custom_call.1} parent=1 // pred_region
      %s111 = ssub.s32 16, 16
      %112 = vsyncadd [#allocation6], %s111
      %s114 = sshll.u32 [#allocation9], 4
      %s115 = int_to_ptr.vmem [resolvable:$true] %s114
      %117 = dma.vmem_to_hbm [thread:$0]  %s115, 16, %s2, [#allocation6]
    $region29: #{tpu_custom_call.1} parent=1 // pred_fallthru
      _
    // Predicated region
    $region30: #{tpu_custom_call.1} parent=1 // pred_check
      _
    $region31: #{tpu_custom_call.1} parent=1 // pred_check_branch
      %119 = sbr.rel (0) target = $region33
    $region32: #{tpu_custom_call.1} parent=1 // pred_region
      %s121 = ssub.s32 16, 16
      %122 = vsyncadd [#allocation11], %s121
      %s124 = sshll.u32 [#allocation10], 4
      %s125 = int_to_ptr.vmem [resolvable:$true] %s124
      %127 = dma.vmem_to_hbm [thread:$0]  %s125, 16, %s3, [#allocation11]
    $region33: #{tpu_custom_call.1} parent=1 // pred_fallthru
      _
    // Predicated region
    $region34: #{tpu_custom_call.1} parent=1 // pred_check
      _
    $region35: #{tpu_custom_call.1} parent=1 // pred_check_branch
      %129 = sbr.rel (0) target = $region37
    $region36: #{tpu_custom_call.1} parent=1 // pred_region
      %130 = dma.done [#allocation6], 16
    $region37: #{tpu_custom_call.1} parent=1 // pred_fallthru
      _
    // Predicated region
    $region38: #{tpu_custom_call.1} parent=1 // pred_check
      _
    $region39: #{tpu_custom_call.1} parent=1 // pred_check_branch
      %132 = sbr.rel (0) target = $region41
    $region40: #{tpu_custom_call.1} parent=1 // pred_region
      %133 = dma.done [#allocation11], 16
    $region41: #{tpu_custom_call.1} parent=1 // pred_fallthru
      _
    %134 = vsyncpa [#allocation5], 1
    %135 = vsyncpa [#allocation8], 1
    %136 = vsyncpa [#allocation6], 1
    %137 = vsyncpa [#allocation11], 1

</llo_original>
